<compile_context>
chip_gen: v7x
topology: tpu7x:2x2x1
jax: 0.10.0
libtpu: 0.0.40
codegen_flags: <defaults>
</compile_context>

<pallas_src>
import functools
import math

import jax
import jax.numpy as jnp
from jax import lax
from jax.experimental import pallas as pl
from jax.experimental.pallas import tpu as pltpu


def _roll_lanes(x, shift):
    """out[..., l] = x[..., (l - shift) % hs]  (jnp.roll semantics, static shift)."""
    hs = x.shape[-1]
    shift %= hs
    if shift == 0:
        return x
    if hs % 128 == 0:
        # Native lane width: in-vreg XLU rotate (idle slot in this mem-bound kernel).
        return pltpu.roll(x, shift, x.ndim - 1)
    # Sub-native lane width (e.g. head_size=32 in the test): static slice+concat.
    return jnp.concatenate([x[..., hs - shift:], x[..., :hs - shift]], axis=-1)


# ----------------------------- Pallas kernel ------------------------------- #
def _rope_kernel(cs_ref, q_ref, k_ref, oq_ref, ok_ref, *,
                 head_size, rotary_dim, is_neox_style, compute_dtype):
    half = rotary_dim // 2
    tT = q_ref.shape[0]
    cdt = compute_dtype

    # Per-token cos/sin, built ONCE per grid step (shared by q and k).
    if is_neox_style:
        # cs block is the raw cache row [cos(half) | sin(half)]; duplicating
        # in-kernel halves the cos/sin HBM traffic vs. expanding in the wrapper.
        cos_b = cs_ref[:, :half].astype(cdt)
        sin_b = cs_ref[:, half:].astype(cdt)
        cos_h = jnp.concatenate([cos_b, cos_b], axis=-1)        # (tT, rotary_dim)
        sin_h = jnp.concatenate([sin_b, sin_b], axis=-1)
    else:
        # GPT-J: cs arrives already interleaved [c0,c0,c1,c1,...|s0,s0,s1,s1,...].
        cos_h = cs_ref[:, :rotary_dim].astype(cdt)
        sin_h = cs_ref[:, rotary_dim:].astype(cdt)

    if rotary_dim < head_size:
        pad = jnp.zeros((tT, head_size - rotary_dim), cdt)
        cos_h = jnp.concatenate([cos_h, pad], axis=-1)
        sin_h = jnp.concatenate([sin_h, pad], axis=-1)

    cos_w = cos_h[:, None, :]     # (tT, 1, head_size) -> sublane broadcast across heads
    sin_w = sin_h[:, None, :]

    # Intra-head lane index (invariant: 0 < rotary_dim <= head_size, rotary_dim even).
    d = lax.broadcasted_iota(jnp.int32, (1, 1, head_size), 2)
    if is_neox_style:
        shift = half
        neg_mask = d < half                          # lanes taking -x[l + shift]
    else:
        shift = 1
        neg_mask = jnp.bitwise_and(d, 1) == 0
    rot_mask = d < rotary_dim

    def apply(x_ref, o_ref):
        x = x_ref[...].astype(cdt)                   # (tT, H, head_size)
        up = _roll_lanes(x, -shift)                  # up[..., l] = x[..., l + shift]
        dn = _roll_lanes(x, shift)                   # dn[..., l] = x[..., l - shift]
        rotated = jnp.where(neg_mask, -up, dn)
        out = x * cos_w + rotated * sin_w
        if rotary_dim < head_size:
            out = jnp.where(rot_mask, out, x)        # pass-through lanes
        o_ref[...] = out.astype(o_ref.dtype)

    apply(q_ref, oq_ref)
    apply(k_ref, ok_ref)


# ------------------------------ module glue -------------------------------- #
def compute_cos_sin_cache(rotary_dim, max_position_embeddings, base):
    """Deterministic parameter init, equivalent to _compute_cos_sin_cache."""
    inv_freq = 1.0 / (base ** (jnp.arange(0, rotary_dim, 2, dtype=jnp.float32)
                               / rotary_dim))
    t = jnp.arange(max_position_embeddings, dtype=jnp.float32)
    freqs = jnp.einsum('i,j->ij', t, inv_freq)
    return jnp.concatenate([jnp.cos(freqs), jnp.sin(freqs)], axis=-1)


_SUBLANE_PACK = {4: 8, 2: 16, 1: 32}   # rows per packed sublane group by itemsize


def rotary_embedding(positions, query, key, *, head_size, rotary_dim,
                     cos_sin_cache, is_neox_style, max_token_block=2048):
    assert rotary_dim % 2 == 0 and 0 < rotary_dim <= head_size
    q_shape, k_shape = query.shape, key.shape
    Wq, Wk = q_shape[-1], k_shape[-1]
    assert Wq % head_size == 0 and Wk % head_size == 0
    Hq, Hk = Wq // head_size, Wk // head_size
    T = math.prod(q_shape[:-1])

    # Metadata-only reshapes to token-major per-head layout.
    q3 = query.reshape(T, Hq, head_size)
    k3 = key.reshape(T, Hk, head_size)

    # cos/sin cache gather (glue, plain JAX); one lane-dense stream per token.
    # TODO(synk): scalar-prefetch positions and gather rows in-kernel (cache in
    # VMEM when it fits) to fuse away this extra HBM pass.
    cs = cos_sin_cache[positions.reshape(T)].astype(jnp.float32)   # (T, rotary_dim)
    if not is_neox_style:
        # GPT-J needs [c0,c0,c1,c1,...]; interleave once here (still a single
        # dense stream into the kernel).
        # TODO(synk): move the interleave in-kernel to halve cos/sin HBM traffic.
        cos, sin = jnp.split(cs, 2, axis=-1)
        cs = jnp.concatenate([jnp.repeat(cos, 2, axis=-1),
                              jnp.repeat(sin, 2, axis=-1)], axis=-1)
    C = cs.shape[-1]

    in_sz = jnp.dtype(query.dtype).itemsize
    compute_dtype = jnp.float32 if in_sz >= 4 else query.dtype   # bf16 math on v6e/v7x
    cd_sz = jnp.dtype(compute_dtype).itemsize
    sublane = _SUBLANE_PACK.get(in_sz, 8)

    # VMEM accounting: double-buffered in/out blocks plus the ~6-7 block-sized
    # compute-dtype intermediates alive per step (x, up, dn, rotated, out,
    # cos/sin).  Budget at 75% of the scoped limit, adapted to the chip.
    try:
        vmem_cap = int(pltpu.get_tpu_info().vmem_capacity_bytes)
    except Exception:
        vmem_cap = 64 * 1024 * 1024           # conservative (v7x-sized) fallback
    vmem_limit = min(96 * 1024 * 1024, max(32 * 1024 * 1024, vmem_cap // 2))
    budget = (3 * vmem_limit) // 4
    per_token = (2 * C * 4                    # cos/sin in (f32), double-buffered
                 + 4 * (Wq + Wk) * in_sz      # q/k in + out blocks, double-buffered
                 + 7 * max(Wq, Wk) * cd_sz)   # peak per-step intermediates
    tT = max(sublane, budget // per_token)
    tT = min(tT, max_token_block, T)
    if T > sublane:
        tT = min(tT, -(-T // 2))              # >= 2 grid steps -> both v7x TCs busy
    if tT < T:
        tT = max(sublane, (tT // sublane) * sublane)
    grid = (pl.cdiv(T, tT),)

    kernel = functools.partial(_rope_kernel, head_size=head_size,
                               rotary_dim=rotary_dim,
                               is_neox_style=is_neox_style,
                               compute_dtype=compute_dtype)
    oq, ok = pl.pallas_call(
        kernel,
        out_shape=(jax.ShapeDtypeStruct((T, Hq, head_size), query.dtype),
                   jax.ShapeDtypeStruct((T, Hk, head_size), key.dtype)),
        grid=grid,
        in_specs=[
            pl.BlockSpec((tT, C), lambda i: (i, 0)),
            pl.BlockSpec((tT, Hq, head_size), lambda i: (i, 0, 0)),
            pl.BlockSpec((tT, Hk, head_size), lambda i: (i, 0, 0)),
        ],
        out_specs=(
            pl.BlockSpec((tT, Hq, head_size), lambda i: (i, 0, 0)),
            pl.BlockSpec((tT, Hk, head_size), lambda i: (i, 0, 0)),
        ),
        # vLLM RoPE is in-place; aliasing pays off when the caller donates
        # query/key under jit (otherwise XLA inserts defensive copies).
        input_output_aliases={1: 0, 2: 1},
        compiler_params=pltpu.CompilerParams(
            dimension_semantics=("parallel",),
            vmem_limit_bytes=vmem_limit),
    )(cs, q3, k3)
    return oq.reshape(q_shape), ok.reshape(k_shape)


# ------------------------------ reference ---------------------------------- #
def rotary_embedding_ref(positions, query, key, *, head_size, rotary_dim,
                         cos_sin_cache, is_neox_style):
    """Pure-JAX mirror of RotaryEmbedding._forward."""
    q = query.reshape(*query.shape[:-1], -1, head_size)
    k = key.reshape(*key.shape[:-1], -1, head_size)
    q_rot, q_pass = q[..., :rotary_dim], q[..., rotary_dim:]
    k_rot, k_pass = k[..., :rotary_dim], k[..., rotary_dim:]
    cos_sin = cos_sin_cache[positions]                    # (B, S, rotary_dim)
    cos, sin = jnp.split(cos_sin, 2, axis=-1)
    if is_neox_style:
        cos = jnp.concatenate([cos, cos], axis=-1)[..., None, :]
        sin = jnp.concatenate([sin, sin], axis=-1)[..., None, :]

        def rot(x):
            x1 = x[..., :rotary_dim // 2]
            x2 = x[..., rotary_dim // 2:]
            return jnp.concatenate([-x2, x1], axis=-1)
    else:
        cos = jnp.repeat(cos, 2, axis=-1)[..., None, :]
        sin = jnp.repeat(sin, 2, axis=-1)[..., None, :]

        def rot(x):
            x1 = x[..., 0::2]
            x2 = x[..., 1::2]
            return jnp.stack([-x2, x1], axis=-1).reshape(x.shape)

    q_rot = q_rot * cos + rot(q_rot) * sin
    k_rot = k_rot * cos + rot(k_rot) * sin
    q = jnp.concatenate([q_rot, q_pass], axis=-1)
    k = jnp.concatenate([k_rot, k_pass], axis=-1)
    return q.reshape(query.shape), k.reshape(key.shape)


# --------------------------------- main ------------------------------------ #
if __name__ == "__main__":
    # Module config (small): head_size=32, rotary_dim=16 (partial rotary),
    # 4 query heads, 2 kv heads, max_position_embeddings=64, base=10000.
    head_size = 32
    rotary_dim = 16
    num_q_heads = 4
    num_kv_heads = 2
    max_pos = 64
    base = 10000
    B, S = 2, 8

    key0 = jax.random.PRNGKey(0)
    kp, kq, kk = jax.random.split(key0, 3)
    positions = jax.random.randint(kp, (B, S), 0, max_pos, dtype=jnp.int32)
    query = jax.random.normal(kq, (B, S, num_q_heads * head_size),
                              dtype=jnp.float32)
    key_ = jax.random.normal(kk, (B, S, num_kv_heads * head_size),
                             dtype=jnp.float32)

    cache = compute_cos_sin_cache(rotary_dim, max_pos, base)

    ok = True
    for is_neox in (True, False):
        q_ref, k_ref = rotary_embedding_ref(
            positions, query, key_, head_size=head_size, rotary_dim=rotary_dim,
            cos_sin_cache=cache, is_neox_style=is_neox)
        q_out, k_out = rotary_embedding(
            positions, query, key_, head_size=head_size, rotary_dim=rotary_dim,
            cos_sin_cache=cache, is_neox_style=is_neox)
        q_out = jax.block_until_ready(q_out)
        k_out = jax.block_until_ready(k_out)
        ok &= bool(jnp.allclose(q_out, q_ref, atol=1e-5, rtol=1e-5))
        ok &= bool(jnp.allclose(k_out, k_ref, atol=1e-5, rtol=1e-5))

    if ok:
        print("KERNEL_OK")
    else:
        raise SystemExit("mismatch vs reference")
</pallas_src>

<mosaic_0001>
module attributes {stable_mosaic.version = 11 : i64} {
  func.func @_rope_kernel(%arg0: i32, %arg1: memref<8x16xf32, #tpu.memory_space<vmem>>, %arg2: memref<8x4x32xf32, #tpu.memory_space<vmem>>, %arg3: memref<8x2x32xf32, #tpu.memory_space<vmem>>, %arg4: memref<8x4x32xf32, #tpu.memory_space<vmem>>, %arg5: memref<8x2x32xf32, #tpu.memory_space<vmem>>) attributes {dimension_semantics = [#tpu.dimension_semantics<parallel>], iteration_bounds = array<i64: 2>, scalar_prefetch = 0 : i64, scratch_operands = 0 : i64, tpu.core_type = #tpu.core_type<tc>, window_params = [{transform_indices = @transform_0, window_bounds = array<i64: 8, 16>}, {transform_indices = @transform_1, window_bounds = array<i64: 8, 4, 32>}, {transform_indices = @transform_2, window_bounds = array<i64: 8, 2, 32>}, {transform_indices = @transform_3, window_bounds = array<i64: 8, 4, 32>}, {transform_indices = @transform_4, window_bounds = array<i64: 8, 2, 32>}]} {
    %c0 = arith.constant 0 : index
    %c0_0 = arith.constant 0 : index
    %0 = vector.load %arg1[%c0, %c0_0] : memref<8x16xf32, #tpu.memory_space<vmem>>, vector<8x8xf32>
    %c0_1 = arith.constant 0 : index
    %c8 = arith.constant 8 : index
    %1 = vector.load %arg1[%c0_1, %c8] : memref<8x16xf32, #tpu.memory_space<vmem>>, vector<8x8xf32>
    %2 = tpu.concatenate %0, %0 in 1 : vector<8x8xf32>, vector<8x8xf32> -> vector<8x16xf32>
    %3 = tpu.concatenate %1, %1 in 1 : vector<8x8xf32>, vector<8x8xf32> -> vector<8x16xf32>
    %cst = arith.constant 0.000000e+00 : f32
    %4 = vector.broadcast %cst : f32 to vector<8x16xf32>
    %5 = tpu.concatenate %2, %4 in 1 : vector<8x16xf32>, vector<8x16xf32> -> vector<8x32xf32>
    %6 = tpu.concatenate %3, %4 in 1 : vector<8x16xf32>, vector<8x16xf32> -> vector<8x32xf32>
    %7 = vector.shape_cast %5 : vector<8x32xf32> to vector<8x1x32xf32>
    %8 = vector.shape_cast %6 : vector<8x32xf32> to vector<8x1x32xf32>
    %9 = tpu.iota {dimensions = array<i32: 2>} : vector<1x1x32xi32>
    %c8_i32 = arith.constant 8 : i32
    %10 = vector.broadcast %c8_i32 : i32 to vector<1x1x32xi32>
    %11 = arith.cmpi slt, %9, %10 : vector<1x1x32xi32>
    %c16_i32 = arith.constant 16 : i32
    %12 = vector.broadcast %c16_i32 : i32 to vector<1x1x32xi32>
    %13 = arith.cmpi slt, %9, %12 : vector<1x1x32xi32>
    %c0_2 = arith.constant 0 : index
    %c0_3 = arith.constant 0 : index
    %c0_4 = arith.constant 0 : index
    %14 = vector.load %arg2[%c0_2, %c0_3, %c0_4] : memref<8x4x32xf32, #tpu.memory_space<vmem>>, vector<8x4x32xf32>
    %15 = vector.extract_strided_slice %14 {offsets = [0, 0, 8], sizes = [8, 4, 24], strides = [1, 1, 1]} : vector<8x4x32xf32> to vector<8x4x24xf32>
    %16 = vector.extract_strided_slice %14 {offsets = [0, 0, 0], sizes = [8, 4, 8], strides = [1, 1, 1]} : vector<8x4x32xf32> to vector<8x4x8xf32>
    %17 = tpu.concatenate %15, %16 in 2 : vector<8x4x24xf32>, vector<8x4x8xf32> -> vector<8x4x32xf32>
    %18 = vector.extract_strided_slice %14 {offsets = [0, 0, 24], sizes = [8, 4, 8], strides = [1, 1, 1]} : vector<8x4x32xf32> to vector<8x4x8xf32>
    %19 = vector.extract_strided_slice %14 {offsets = [0, 0, 0], sizes = [8, 4, 24], strides = [1, 1, 1]} : vector<8x4x32xf32> to vector<8x4x24xf32>
    %20 = tpu.concatenate %18, %19 in 2 : vector<8x4x8xf32>, vector<8x4x24xf32> -> vector<8x4x32xf32>
    %cst_5 = arith.constant 0.000000e+00 : f32
    %21 = vector.broadcast %cst_5 : f32 to vector<8x4x32xf32>
    %22 = arith.subf %21, %17 : vector<8x4x32xf32>
    %23 = vector.shape_cast %11 : vector<1x1x32xi1> to vector<1x1x32xi1>
    %24 = vector.broadcast %23 : vector<1x1x32xi1> to vector<8x4x32xi1>
    %25 = arith.select %24, %22, %20 : vector<8x4x32xi1>, vector<8x4x32xf32>
    %26 = vector.broadcast %7 : vector<8x1x32xf32> to vector<8x4x32xf32>
    %27 = arith.mulf %14, %26 : vector<8x4x32xf32>
    %28 = vector.broadcast %8 : vector<8x1x32xf32> to vector<8x4x32xf32>
    %29 = arith.mulf %25, %28 : vector<8x4x32xf32>
    %30 = arith.addf %27, %29 : vector<8x4x32xf32>
    %31 = vector.shape_cast %13 : vector<1x1x32xi1> to vector<1x1x32xi1>
    %32 = vector.broadcast %31 : vector<1x1x32xi1> to vector<8x4x32xi1>
    %33 = arith.select %32, %30, %14 : vector<8x4x32xi1>, vector<8x4x32xf32>
    %c0_6 = arith.constant 0 : index
    %c0_7 = arith.constant 0 : index
    %c0_8 = arith.constant 0 : index
    %34 = vector.load %arg4[%c0_6, %c0_7, %c0_8] : memref<8x4x32xf32, #tpu.memory_space<vmem>>, vector<8x4x32xf32>
    tpu.vector_store %arg4[%c0_6, %c0_7, %c0_8], %33 {strides = array<i32>} : memref<8x4x32xf32, #tpu.memory_space<vmem>>, vector<8x4x32xf32>,
    %c0_9 = arith.constant 0 : index
    %c0_10 = arith.constant 0 : index
    %c0_11 = arith.constant 0 : index
    %35 = vector.load %arg3[%c0_9, %c0_10, %c0_11] : memref<8x2x32xf32, #tpu.memory_space<vmem>>, vector<8x2x32xf32>
    %36 = vector.extract_strided_slice %35 {offsets = [0, 0, 8], sizes = [8, 2, 24], strides = [1, 1, 1]} : vector<8x2x32xf32> to vector<8x2x24xf32>
    %37 = vector.extract_strided_slice %35 {offsets = [0, 0, 0], sizes = [8, 2, 8], strides = [1, 1, 1]} : vector<8x2x32xf32> to vector<8x2x8xf32>
    %38 = tpu.concatenate %36, %37 in 2 : vector<8x2x24xf32>, vector<8x2x8xf32> -> vector<8x2x32xf32>
    %39 = vector.extract_strided_slice %35 {offsets = [0, 0, 24], sizes = [8, 2, 8], strides = [1, 1, 1]} : vector<8x2x32xf32> to vector<8x2x8xf32>
    %40 = vector.extract_strided_slice %35 {offsets = [0, 0, 0], sizes = [8, 2, 24], strides = [1, 1, 1]} : vector<8x2x32xf32> to vector<8x2x24xf32>
    %41 = tpu.concatenate %39, %40 in 2 : vector<8x2x8xf32>, vector<8x2x24xf32> -> vector<8x2x32xf32>
    %cst_12 = arith.constant 0.000000e+00 : f32
    %42 = vector.broadcast %cst_12 : f32 to vector<8x2x32xf32>
    %43 = arith.subf %42, %38 : vector<8x2x32xf32>
    %44 = vector.shape_cast %11 : vector<1x1x32xi1> to vector<1x1x32xi1>
    %45 = vector.broadcast %44 : vector<1x1x32xi1> to vector<8x2x32xi1>
    %46 = arith.select %45, %43, %41 : vector<8x2x32xi1>, vector<8x2x32xf32>
    %47 = vector.broadcast %7 : vector<8x1x32xf32> to vector<8x2x32xf32>
    %48 = arith.mulf %35, %47 : vector<8x2x32xf32>
    %49 = vector.broadcast %8 : vector<8x1x32xf32> to vector<8x2x32xf32>
    %50 = arith.mulf %46, %49 : vector<8x2x32xf32>
    %51 = arith.addf %48, %50 : vector<8x2x32xf32>
    %52 = vector.shape_cast %13 : vector<1x1x32xi1> to vector<1x1x32xi1>
    %53 = vector.broadcast %52 : vector<1x1x32xi1> to vector<8x2x32xi1>
    %54 = arith.select %53, %51, %35 : vector<8x2x32xi1>, vector<8x2x32xf32>
    %c0_13 = arith.constant 0 : index
    %c0_14 = arith.constant 0 : index
    %c0_15 = arith.constant 0 : index
    %55 = vector.load %arg5[%c0_13, %c0_14, %c0_15] : memref<8x2x32xf32, #tpu.memory_space<vmem>>, vector<8x2x32xf32>
    tpu.vector_store %arg5[%c0_13, %c0_14, %c0_15], %54 {strides = array<i32>} : memref<8x2x32xf32, #tpu.memory_space<vmem>>, vector<8x2x32xf32>,
    return
  }
  func.func @transform_0(%arg0: i32) -> (i32, i32) {
    %c0_i32 = arith.constant 0 : i32
    %c0_i32_0 = arith.constant 0 : i32
    return %arg0, %c0_i32 : i32, i32
  }
  func.func @transform_1(%arg0: i32) -> (i32, i32, i32) {
    %c0_i32 = arith.constant 0 : i32
    %c0_i32_0 = arith.constant 0 : i32
    %c0_i32_1 = arith.constant 0 : i32
    return %arg0, %c0_i32, %c0_i32_0 : i32, i32, i32
  }
  func.func @transform_2(%arg0: i32) -> (i32, i32, i32) {
    %c0_i32 = arith.constant 0 : i32
    %c0_i32_0 = arith.constant 0 : i32
    %c0_i32_1 = arith.constant 0 : i32
    return %arg0, %c0_i32, %c0_i32_0 : i32, i32, i32
  }
  func.func @transform_3(%arg0: i32) -> (i32, i32, i32) {
    %c0_i32 = arith.constant 0 : i32
    %c0_i32_0 = arith.constant 0 : i32
    %c0_i32_1 = arith.constant 0 : i32
    return %arg0, %c0_i32, %c0_i32_0 : i32, i32, i32
  }
  func.func @transform_4(%arg0: i32) -> (i32, i32, i32) {
    %c0_i32 = arith.constant 0 : i32
    %c0_i32_0 = arith.constant 0 : i32
    %c0_i32_1 = arith.constant 0 : i32
    return %arg0, %c0_i32, %c0_i32_0 : i32, i32, i32
  }
}

</mosaic_0001>

<llo_original>
// kernel: tpu_custom_call.1
$region0: #{tpu_custom_call.1}
  #allocation0 [shape = 'u32[]', space=smem, size = 0x4, offset = 0x4, fixed_abs, tag = 'smem constant byte address 0x4 - core index']
  #allocation1 [shape = 'u32[144,128]{1,0:T(1,128)}', space=vmem, size = 0x12000, scoped, tag = 'internal scratch']
  %s0 = inlined_call_operand.vmem [shape: f32[16,16], index: 0, kind: input, shape index: {}]
  %s1 = inlined_call_operand.hbm [shape: f32[16,4,32], index: 1, kind: input, shape index: {}, may-alias: {1,3}]
  %s2 = inlined_call_operand.hbm [shape: f32[16,2,32], index: 2, kind: input, shape index: {}, may-alias: {2,4}]
  %s3 = inlined_call_operand.hbm [shape: f32[16,4,32], index: 3, kind: output, shape index: {0}, may-alias: {1,3}]
  %s4 = inlined_call_operand.hbm [shape: f32[16,2,32], index: 4, kind: output, shape index: {1}, may-alias: {2,4}]
  %5 = xla_tuple %s3, %s4
  %s6 = sld [smem:[#allocation0]]
  $region61: #{tpu_custom_call.1} parent=0
    _
  %s8 = ssub.s32 1, %s6
  %s9 = scalar_select 0, %s8, %s6
  $region1: #{tpu_custom_call.1} parent=0
    #allocation2 [shape = 'u8[32768]{0}', space=vmem, size = 0x8000, scoped, tag = 'input window, operand 1']
    #allocation3 [shape = 's32[2]{0}', space=sflag, size = 0x8, scoped, tag = 'scoped memory for tpu_custom_call.1']
    #allocation4 [shape = 's32[2]{0}', space=sflag, size = 0x8, scoped, tag = 'scoped memory for tpu_custom_call.1']
    #allocation5 [shape = 'u8[16384]{0}', space=vmem, size = 0x4000, scoped, tag = 'input window, operand 2']
    #allocation6 [shape = 's32[2]{0}', space=sflag, size = 0x8, scoped, tag = 'scoped memory for tpu_custom_call.1']
    #allocation7 [shape = 'u8[32768]{0}', space=vmem, size = 0x8000, scoped, tag = 'output window, operand 0']
    #allocation8 [shape = 'u8[16384]{0}', space=vmem, size = 0x4000, scoped, tag = 'output window, operand 1']
    #allocation9 [shape = 's32[2]{0}', space=sflag, size = 0x8, scoped, tag = 'scoped memory for tpu_custom_call.1']
    %10 = vsyncpa [#allocation3], 0
    %s11 = scalar_lea.sflag [#allocation3], 1
    %12 = vsyncpa %s11, 0
    %13 = vsyncpa [#allocation6], 0
    %s14 = scalar_lea.sflag [#allocation6], 1
    %15 = vsyncpa %s14, 0
    %16 = vsyncpa [#allocation4], 0
    %s17 = scalar_lea.sflag [#allocation4], 1
    %18 = vsyncpa %s17, 0
    %19 = vsyncpa [#allocation9], 0
    %s20 = scalar_lea.sflag [#allocation9], 1
    %21 = vsyncpa %s20, 0
    loop: start=0, step=1, limit=4
    $region2: #{tpu_custom_call.1} parent=1 // loop_pre_header
      _
    $region3: #{tpu_custom_call.1} parent=1 // loop_header
      %s23 = sphi 0, %s27
      %p24 = scmp.ge.s32.totalorder %s23, 4
      %s33 = sphi 0, %s35
      %s36 = sphi 0, %s33
      %s37 = sphi 0, %s36
      %s53 = sphi 0, %s37
      %s59 = sphi 0, %s61
      %s62 = sphi 0, %s59
      %s63 = sphi 0, %s62
      %s79 = sphi 0, %s63
      %s85 = sphi 0, %s87
      %s88 = sphi 0, %s85
      %s89 = sphi 0, %s88
      %s105 = sphi 0, %s89
      %s111 = sphi 0, %s113
      %s114 = sphi 0, %s111
      %s115 = sphi 0, %s114
      %s131 = sphi 0, %s115
      %s137 = sphi 0, %s139
      %s140 = sphi 0, %s137
      %s141 = sphi 0, %s140
      %s157 = sphi 0, %s141
    $region4: #{tpu_custom_call.1} parent=1 // loop_header_branch
      %26 = sbr.rel (%p24) target = $region8
    $region5: #{tpu_custom_call.1} parent=1 // loop_body
      %s28 = ssub.s32 %s23, 1
      %s29 = ssub.s32 %s23, 2
      %s30 = sadd.s32 %s23, 1
      %s31 = ssub.s32 %s23, %s30
      %p32 = scmp.eq.s32.totalorder %s31, 0
      %s34 = sadd.s32 %s33, 1
      %s35 = scalar_select %p32, %s33, %s34
      %p38 = pneg %p32
      %p39 = scmp.eq.s32.totalorder %s23, 1
      %p40 = por %p38, %p39
      %p41 = scmp.ne.s32.totalorder %s33, %s36
      %p42 = scmp.eq.s32.totalorder %s23, 0
      %p43 = por %p41, %p42
      %p44 = scmp.ne.s32.totalorder %s33, %s36
      %p45 = scmp.eq.s32.totalorder %s28, 1
      %p46 = por %p44, %p45
      %p47 = scmp.ne.s32.totalorder %s36, %s37
      %p48 = scmp.eq.s32.totalorder %s28, 0
      %p49 = por %p47, %p48
      %p50 = scmp.ne.s32.totalorder %s36, %s37
      %p51 = scmp.eq.s32.totalorder %s29, 1
      %p52 = por %p50, %p51
      %p54 = scmp.ne.s32.totalorder %s37, %s53
      %p55 = scmp.eq.s32.totalorder %s29, 0
      %p56 = por %p54, %p55
      %s57 = ssub.s32 %s23, %s30
      %p58 = scmp.eq.s32.totalorder %s57, 0
      %s60 = sadd.s32 %s59, 1
      %s61 = scalar_select %p58, %s59, %s60
      %p64 = pneg %p58
      %p65 = scmp.eq.s32.totalorder %s23, 1
      %p66 = por %p64, %p65
      %p67 = scmp.ne.s32.totalorder %s59, %s62
      %p68 = scmp.eq.s32.totalorder %s23, 0
      %p69 = por %p67, %p68
      %p70 = scmp.ne.s32.totalorder %s59, %s62
      %p71 = scmp.eq.s32.totalorder %s28, 1
      %p72 = por %p70, %p71
      %p73 = scmp.ne.s32.totalorder %s62, %s63
      %p74 = scmp.eq.s32.totalorder %s28, 0
      %p75 = por %p73, %p74
      %p76 = scmp.ne.s32.totalorder %s62, %s63
      %p77 = scmp.eq.s32.totalorder %s29, 1
      %p78 = por %p76, %p77
      %p80 = scmp.ne.s32.totalorder %s63, %s79
      %p81 = scmp.eq.s32.totalorder %s29, 0
      %p82 = por %p80, %p81
      %s83 = ssub.s32 %s23, %s30
      %p84 = scmp.eq.s32.totalorder %s83, 0
      %s86 = sadd.s32 %s85, 1
      %s87 = scalar_select %p84, %s85, %s86
      %p90 = pneg %p84
      %p91 = scmp.eq.s32.totalorder %s23, 1
      %p92 = por %p90, %p91
      %p93 = scmp.ne.s32.totalorder %s85, %s88
      %p94 = scmp.eq.s32.totalorder %s23, 0
      %p95 = por %p93, %p94
      %p96 = scmp.ne.s32.totalorder %s85, %s88
      %p97 = scmp.eq.s32.totalorder %s28, 1
      %p98 = por %p96, %p97
      %p99 = scmp.ne.s32.totalorder %s88, %s89
      %p100 = scmp.eq.s32.totalorder %s28, 0
      %p101 = por %p99, %p100
      %p102 = scmp.ne.s32.totalorder %s88, %s89
      %p103 = scmp.eq.s32.totalorder %s29, 1
      %p104 = por %p102, %p103
      %p106 = scmp.ne.s32.totalorder %s89, %s105
      %p107 = scmp.eq.s32.totalorder %s29, 0
      %p108 = por %p106, %p107
      %s109 = ssub.s32 %s23, %s30
      %p110 = scmp.eq.s32.totalorder %s109, 0
      %s112 = sadd.s32 %s111, 1
      %s113 = scalar_select %p110, %s111, %s112
      %p116 = pneg %p110
      %p117 = scmp.eq.s32.totalorder %s23, 1
      %p118 = por %p116, %p117
      %p119 = scmp.ne.s32.totalorder %s111, %s114
      %p120 = scmp.eq.s32.totalorder %s23, 0
      %p121 = por %p119, %p120
      %p122 = scmp.ne.s32.totalorder %s111, %s114
      %p123 = scmp.eq.s32.totalorder %s28, 1
      %p124 = por %p122, %p123
      %p125 = scmp.ne.s32.totalorder %s114, %s115
      %p126 = scmp.eq.s32.totalorder %s28, 0
      %p127 = por %p125, %p126
      %p128 = scmp.ne.s32.totalorder %s114, %s115
      %p129 = scmp.eq.s32.totalorder %s29, 1
      %p130 = por %p128, %p129
      %p132 = scmp.ne.s32.totalorder %s115, %s131
      %p133 = scmp.eq.s32.totalorder %s29, 0
      %p134 = por %p132, %p133
      %s135 = ssub.s32 %s23, %s30
      %p136 = scmp.eq.s32.totalorder %s135, 0
      %s138 = sadd.s32 %s137, 1
      %s139 = scalar_select %p136, %s137, %s138
      %p142 = pneg %p136
      %p143 = scmp.eq.s32.totalorder %s23, 1
      %p144 = por %p142, %p143
      %p145 = scmp.ne.s32.totalorder %s137, %s140
      %p146 = scmp.eq.s32.totalorder %s23, 0
      %p147 = por %p145, %p146
      %p148 = scmp.ne.s32.totalorder %s137, %s140
      %p149 = scmp.eq.s32.totalorder %s28, 1
      %p150 = por %p148, %p149
      %p151 = scmp.ne.s32.totalorder %s140, %s141
      %p152 = scmp.eq.s32.totalorder %s28, 0
      %p153 = por %p151, %p152
      %p154 = scmp.ne.s32.totalorder %s140, %s141
      %p155 = scmp.eq.s32.totalorder %s29, 1
      %p156 = por %p154, %p155
      %p158 = scmp.ne.s32.totalorder %s141, %s157
      %p159 = scmp.eq.s32.totalorder %s29, 0
      %p160 = por %p158, %p159
      %p161 = scmp.le.s32.totalorder 1, %s23
      %p162 = scmp.lt.s32.totalorder %s23, 3
      %p163 = pnand %p161, %p162
      %p164 = pneg %p163
      // Predicated region
      $region9: #{tpu_custom_call.1} parent=5 // pred_check
        _
      $region10: #{tpu_custom_call.1} parent=5 // pred_check_branch
        %166 = sbr.rel (%p163) target = $region12
      $region11: #{tpu_custom_call.1} parent=5 // pred_region
        %s167 = ssub.s32 %s23, 1
      $region12: #{tpu_custom_call.1} parent=5 // pred_fallthru
        _
      %p168 = scmp.lt.s32.totalorder %s23, 2
      // Predicated region
      $region13: #{tpu_custom_call.1} parent=5 // pred_check
        %p169 = pneg %p168
      $region14: #{tpu_custom_call.1} parent=5 // pred_check_branch
        %171 = sbr.rel (%p169) target = $region16
      $region15: #{tpu_custom_call.1} parent=5 // pred_region
        // Predicated region
        $region17: #{tpu_custom_call.1} parent=15 // pred_check
          %p172 = pneg %p43
        $region18: #{tpu_custom_call.1} parent=15 // pred_check_branch
          %174 = sbr.rel (%p172) target = $region20
        $region19: #{tpu_custom_call.1} parent=15 // pred_region
          %p175 = scmp.lt.s32.totalorder %s23, 1
          %s176 = scalar_select %p175, %s23, 1
          %s177 = smul.addr %s176, 8
          %s178 = scalar_lea.vmem %s0, %s177
        $region20: #{tpu_custom_call.1} parent=15 // pred_fallthru
          _
        // Predicated region
        $region21: #{tpu_custom_call.1} parent=15 // pred_check
          %p179 = pneg %p69
        $region22: #{tpu_custom_call.1} parent=15 // pred_check_branch
          %181 = sbr.rel (%p179) target = $region24
        $region23: #{tpu_custom_call.1} parent=15 // pred_region
          %s182 = sand.u32 %s59, 1
          %s183 = scalar_lea.sflag [#allocation3], %s182
          %s184 = sand.u32 %s59, 1
          %s185 = smul.addr %s184, 32
          %s186 = scalar_lea.vmem [#allocation2], %s185
          %s187 = smul.u32 8, %s23
          %s189 = ssub.s32 512, 512
          %190 = vsyncadd %s183, %s189
          %s191 = smul.addr %s187, 64
          %s192 = scalar_lea.hbm %s1, %s191
          %s193 = sshll.u32 %s186, 4
          %s194 = int_to_ptr.vmem [resolvable:$true] %s193
          %199 = dma.hbm_to_vmem [thread:$0]  %s192, 512, %s194, %s183, 64, 64, 4
        $region24: #{tpu_custom_call.1} parent=15 // pred_fallthru
          _
        // Predicated region
        $region25: #{tpu_custom_call.1} parent=15 // pred_check
          %p200 = pneg %p95
        $region26: #{tpu_custom_call.1} parent=15 // pred_check_branch
          %202 = sbr.rel (%p200) target = $region28
        $region27: #{tpu_custom_call.1} parent=15 // pred_region
          %s203 = sand.u32 %s85, 1
          %s204 = scalar_lea.sflag [#allocation6], %s203
          %s205 = sand.u32 %s85, 1
          %s206 = smul.addr %s205, 16
          %s207 = scalar_lea.vmem [#allocation5], %s206
          %s208 = smul.u32 8, %s23
          %s210 = ssub.s32 256, 256
          %211 = vsyncadd %s204, %s210
          %s212 = smul.addr %s208, 32
          %s213 = scalar_lea.hbm %s2, %s212
          %s214 = sshll.u32 %s207, 4
          %s215 = int_to_ptr.vmem [resolvable:$true] %s214
          %220 = dma.hbm_to_vmem [thread:$0]  %s213, 256, %s215, %s204, 32, 32, 2
        $region28: #{tpu_custom_call.1} parent=15 // pred_fallthru
          _
      $region16: #{tpu_custom_call.1} parent=5 // pred_fallthru
        _
      %p221 = scmp.le.s32.totalorder 1, %s23
      %p222 = scmp.lt.s32.totalorder %s23, 3
      %p223 = pnand %p221, %p222
      %p224 = pneg %p223
      // Predicated region
      $region29: #{tpu_custom_call.1} parent=5 // pred_check
        _
      $region30: #{tpu_custom_call.1} parent=5 // pred_check_branch
        %226 = sbr.rel (%p223) target = $region32
      $region31: #{tpu_custom_call.1} parent=5 // pred_region
        %s227 = ssub.s32 %s23, 1
        %s228 = sand.u32 %s62, 1
        %s229 = scalar_lea.sflag [#allocation3], %s228
        %s230 = sand.u32 %s62, 1
        %s231 = smul.addr %s230, 32
        %s232 = scalar_lea.vmem [#allocation2], %s231
        // Predicated region
        $region33: #{tpu_custom_call.1} parent=31 // pred_check
          %p233 = pneg %p75
        $region34: #{tpu_custom_call.1} parent=31 // pred_check_branch
          %235 = sbr.rel (%p233) target = $region36
        $region35: #{tpu_custom_call.1} parent=31 // pred_region
          %236 = dma.done %s229, 512
        $region36: #{tpu_custom_call.1} parent=31 // pred_fallthru
          _
        %s237 = sand.u32 %s88, 1
        %s238 = scalar_lea.sflag [#allocation6], %s237
        %s239 = sand.u32 %s88, 1
        %s240 = smul.addr %s239, 16
        %s241 = scalar_lea.vmem [#allocation5], %s240
        // Predicated region
        $region37: #{tpu_custom_call.1} parent=31 // pred_check
          %p242 = pneg %p101
        $region38: #{tpu_custom_call.1} parent=31 // pred_check_branch
          %244 = sbr.rel (%p242) target = $region40
        $region39: #{tpu_custom_call.1} parent=31 // pred_region
          %245 = dma.done %s238, 256
        $region40: #{tpu_custom_call.1} parent=31 // pred_fallthru
          _
        %p246 = scmp.lt.s32.totalorder %s28, 1
        %s247 = scalar_select %p246, %s28, 1
        %s248 = smul.addr %s247, 8
        %s249 = scalar_lea.vmem %s0, %s248
        %p250 = pneg %p49
        %p251 = pneg %p46
        %s252 = sand.u32 %s62, 1
        %s253 = scalar_lea.sflag [#allocation3], %s252
        %s254 = sand.u32 %s62, 1
        %s255 = smul.addr %s254, 32
        %s256 = scalar_lea.vmem [#allocation2], %s255
        %p257 = pneg %p75
        %p258 = pneg %p72
        %s259 = sand.u32 %s88, 1
        %s260 = scalar_lea.sflag [#allocation6], %s259
        %s261 = sand.u32 %s88, 1
        %s262 = smul.addr %s261, 16
        %s263 = scalar_lea.vmem [#allocation5], %s262
        %p264 = pneg %p101
        %p265 = pneg %p98
        %p266 = pneg %p127
        %p267 = pneg %p124
        %s268 = sand.u32 %s114, 1
        %s269 = scalar_lea.sflag [#allocation4], %s268
        %s270 = sand.u32 %s114, 1
        %s271 = smul.addr %s270, 32
        %s272 = scalar_lea.vmem [#allocation7], %s271
        %p273 = pneg %p153
        %p274 = pneg %p150
        %s275 = sand.u32 %s140, 1
        %s276 = scalar_lea.sflag [#allocation9], %s275
        %s277 = sand.u32 %s140, 1
        %s278 = smul.addr %s277, 16
        %s279 = scalar_lea.vmem [#allocation8], %s278
        %p280 = scmp.lt.s32.totalorder %s28, 1
        %s281 = scalar_select %p280, %s28, 1
        %s282 = smul.addr %s281, 8
        %s283 = scalar_lea.vmem %s0, %s282
        %s284 = smul.u32 8, %s28
        %s285 = smul.u32 8, %s28
        %s286 = smul.u32 8, %s28
        %s287 = smul.u32 8, %s28
        %v288 = vld [vmem:[%s283] sm:$0xff]
        %290 = vrot.lane.b32.xlu0 %v288, 8
        %v291 = vpop.permute.xlu0 %290
        %vm293 = vcmask 64512
        %v294 = vsel %vm293, %v288, %v291
        %295 = vrot.lane.b32.xlu0 %v288, 120
        %v296 = vpop.permute.xlu0 %295
        %v298 = vsel %vm293, %v296, %v288
        %vm299 = vcmask 130048
        %v300 = vsel %vm299, %v294, 0.0
        %v301 = vsel %vm299, %v298, 0.0
        %v303 = vcombine.high %v300, %v300
        %v305 = vunpack.c.l.s4 1966171168
        %v306 = vunpack.c.0.s8 %v305
        %v307 = vlaneseq
        %v308 = vshrl.u32 %v307, 7
        %v309 = vsub.s32 %v306, %v308
        %v310 = vrot.slane %v300, %v309
        %v312 = vunpack.c.l.s4 1966171168
        %v313 = vunpack.c.0.s8 %v312
        %v314 = vlaneseq
        %v315 = vshrl.u32 %v314, 7
        %v316 = vsub.s32 %v313, %v315
        %v317 = vrot.slane %v303, %v316
        %v318 = vcombine.high %v310, %v310
        %v319 = vcombine.high %v317, %v317
        %v321 = vunpack.c.l.s4 1966171168
        %v322 = vunpack.c.0.s8 %v321
        %v323 = vlaneseq
        %v324 = vshrl.u32 %v323, 7
        %v325 = vsub.s32 %v322, %v324
        %v326 = vrot.slane %v310, %v325
        %v328 = vunpack.c.l.s4 1966171168
        %v329 = vunpack.c.0.s8 %v328
        %v330 = vlaneseq
        %v331 = vshrl.u32 %v330, 7
        %v332 = vsub.s32 %v329, %v331
        %v333 = vrot.slane %v317, %v332
        %v335 = vunpack.c.l.s4 1966171168
        %v336 = vunpack.c.0.s8 %v335
        %v337 = vlaneseq
        %v338 = vshrl.u32 %v337, 7
        %v339 = vsub.s32 %v336, %v338
        %v340 = vrot.slane %v318, %v339
        %v342 = vunpack.c.l.s4 1966171168
        %v343 = vunpack.c.0.s8 %v342
        %v344 = vlaneseq
        %v345 = vshrl.u32 %v344, 7
        %v346 = vsub.s32 %v343, %v345
        %v347 = vrot.slane %v319, %v346
        %v348 = vcombine.high %v326, %v326
        %v349 = vcombine.high %v333, %v333
        %v350 = vcombine.high %v340, %v340
        %v351 = vcombine.high %v347, %v347
        %v353 = vcombine.high %v301, %v301
        %v355 = vunpack.c.l.s4 1966171168
        %v356 = vunpack.c.0.s8 %v355
        %v357 = vlaneseq
        %v358 = vshrl.u32 %v357, 7
        %v359 = vsub.s32 %v356, %v358
        %v360 = vrot.slane %v301, %v359
        %v362 = vunpack.c.l.s4 1966171168
        %v363 = vunpack.c.0.s8 %v362
        %v364 = vlaneseq
        %v365 = vshrl.u32 %v364, 7
        %v366 = vsub.s32 %v363, %v365
        %v367 = vrot.slane %v353, %v366
        %v368 = vcombine.high %v360, %v360
        %v369 = vcombine.high %v367, %v367
        %v371 = vunpack.c.l.s4 1966171168
        %v372 = vunpack.c.0.s8 %v371
        %v373 = vlaneseq
        %v374 = vshrl.u32 %v373, 7
        %v375 = vsub.s32 %v372, %v374
        %v376 = vrot.slane %v360, %v375
        %v378 = vunpack.c.l.s4 1966171168
        %v379 = vunpack.c.0.s8 %v378
        %v380 = vlaneseq
        %v381 = vshrl.u32 %v380, 7
        %v382 = vsub.s32 %v379, %v381
        %v383 = vrot.slane %v367, %v382
        %v385 = vunpack.c.l.s4 1966171168
        %v386 = vunpack.c.0.s8 %v385
        %v387 = vlaneseq
        %v388 = vshrl.u32 %v387, 7
        %v389 = vsub.s32 %v386, %v388
        %v390 = vrot.slane %v368, %v389
        %v392 = vunpack.c.l.s4 1966171168
        %v393 = vunpack.c.0.s8 %v392
        %v394 = vlaneseq
        %v395 = vshrl.u32 %v394, 7
        %v396 = vsub.s32 %v393, %v395
        %v397 = vrot.slane %v369, %v396
        %v398 = vcombine.high %v376, %v376
        %v399 = vcombine.high %v383, %v383
        %v400 = vcombine.high %v390, %v390
        %v401 = vcombine.high %v397, %v397
        %v402 = vlaneseq
        %v403 = vand.u32 %v402, 127
        %vm404 = vcmp.lt.s32.totalorder %v403, 8
        %vm405 = vcmp.lt.s32.totalorder %v403, 16
        %v406 = vld [vmem:[%s232] sm:$0xf]
        %v407 = vld [vmem:[%s232 + $0x4] sm:$0xf]
        %v408 = vld [vmem:[%s232 + $0x8] sm:$0xf]
        %v409 = vld [vmem:[%s232 + $0xc] sm:$0xf]
        %v410 = vld [vmem:[%s232 + $0x10] sm:$0xf]
        %v411 = vld [vmem:[%s232 + $0x14] sm:$0xf]
        %v412 = vld [vmem:[%s232 + $0x18] sm:$0xf]
        %v413 = vld [vmem:[%s232 + $0x1c] sm:$0xf]
        %422 = vrot.lane.b32.xlu0 %v406, 120
        %v423 = vpop.permute.xlu0 %422
        %424 = vrot.lane.b32.xlu0 %v407, 120
        %v425 = vpop.permute.xlu0 %424
        %426 = vrot.lane.b32.xlu0 %v408, 120
        %v427 = vpop.permute.xlu0 %426
        %428 = vrot.lane.b32.xlu0 %v409, 120
        %v429 = vpop.permute.xlu0 %428
        %430 = vrot.lane.b32.xlu0 %v410, 120
        %v431 = vpop.permute.xlu0 %430
        %432 = vrot.lane.b32.xlu0 %v411, 120
        %v433 = vpop.permute.xlu0 %432
        %434 = vrot.lane.b32.xlu0 %v412, 120
        %v435 = vpop.permute.xlu0 %434
        %436 = vrot.lane.b32.xlu0 %v413, 120
        %v437 = vpop.permute.xlu0 %436
        %446 = vrot.lane.b32.xlu0 %v406, 24
        %v447 = vpop.permute.xlu0 %446
        %448 = vrot.lane.b32.xlu0 %v407, 24
        %v449 = vpop.permute.xlu0 %448
        %450 = vrot.lane.b32.xlu0 %v408, 24
        %v451 = vpop.permute.xlu0 %450
        %452 = vrot.lane.b32.xlu0 %v409, 24
        %v453 = vpop.permute.xlu0 %452
        %454 = vrot.lane.b32.xlu0 %v410, 24
        %v455 = vpop.permute.xlu0 %454
        %456 = vrot.lane.b32.xlu0 %v411, 24
        %v457 = vpop.permute.xlu0 %456
        %458 = vrot.lane.b32.xlu0 %v412, 24
        %v459 = vpop.permute.xlu0 %458
        %460 = vrot.lane.b32.xlu0 %v413, 24
        %v461 = vpop.permute.xlu0 %460
        %vm470 = vcmask 195584
        %v471 = vsel %vm470, %v423, %v447
        %v472 = vsel %vm470, %v425, %v449
        %v473 = vsel %vm470, %v427, %v451
        %v474 = vsel %vm470, %v429, %v453
        %v475 = vsel %vm470, %v431, %v455
        %v476 = vsel %vm470, %v433, %v457
        %v477 = vsel %vm470, %v435, %v459
        %v478 = vsel %vm470, %v437, %v461
        %479 = vrot.lane.b32.xlu0 %v406, 104
        %v480 = vpop.permute.xlu0 %479
        %481 = vrot.lane.b32.xlu0 %v407, 104
        %v482 = vpop.permute.xlu0 %481
        %483 = vrot.lane.b32.xlu0 %v408, 104
        %v484 = vpop.permute.xlu0 %483
        %485 = vrot.lane.b32.xlu0 %v409, 104
        %v486 = vpop.permute.xlu0 %485
        %487 = vrot.lane.b32.xlu0 %v410, 104
        %v488 = vpop.permute.xlu0 %487
        %489 = vrot.lane.b32.xlu0 %v411, 104
        %v490 = vpop.permute.xlu0 %489
        %491 = vrot.lane.b32.xlu0 %v412, 104
        %v492 = vpop.permute.xlu0 %491
        %493 = vrot.lane.b32.xlu0 %v413, 104
        %v494 = vpop.permute.xlu0 %493
        %503 = vrot.lane.b32.xlu0 %v406, 8
        %v504 = vpop.permute.xlu0 %503
        %505 = vrot.lane.b32.xlu0 %v407, 8
        %v506 = vpop.permute.xlu0 %505
        %507 = vrot.lane.b32.xlu0 %v408, 8
        %v508 = vpop.permute.xlu0 %507
        %509 = vrot.lane.b32.xlu0 %v409, 8
        %v510 = vpop.permute.xlu0 %509
        %511 = vrot.lane.b32.xlu0 %v410, 8
        %v512 = vpop.permute.xlu0 %511
        %513 = vrot.lane.b32.xlu0 %v411, 8
        %v514 = vpop.permute.xlu0 %513
        %515 = vrot.lane.b32.xlu0 %v412, 8
        %v516 = vpop.permute.xlu0 %515
        %517 = vrot.lane.b32.xlu0 %v413, 8
        %v518 = vpop.permute.xlu0 %517
        %v527 = vsel %vm293, %v480, %v504
        %v528 = vsel %vm293, %v482, %v506
        %v529 = vsel %vm293, %v484, %v508
        %v530 = vsel %vm293, %v486, %v510
        %v531 = vsel %vm293, %v488, %v512
        %v532 = vsel %vm293, %v490, %v514
        %v533 = vsel %vm293, %v492, %v516
        %v534 = vsel %vm293, %v494, %v518
        %v535 = vsub.f32 0.0, %v471
        %v536 = vsub.f32 0.0, %v472
        %v537 = vsub.f32 0.0, %v473
        %v538 = vsub.f32 0.0, %v474
        %v539 = vsub.f32 0.0, %v475
        %v540 = vsub.f32 0.0, %v476
        %v541 = vsub.f32 0.0, %v477
        %v542 = vsub.f32 0.0, %v478
        %v543 = vsel %vm404, 1, 0
        %vm544 = vcmp.eq.s32.totalorder %v543, 1
        %v545 = vsel %vm544, %v535, %v527
        %v546 = vsel %vm544, %v536, %v528
        %v547 = vsel %vm544, %v537, %v529
        %v548 = vsel %vm544, %v538, %v530
        %v549 = vsel %vm544, %v539, %v531
        %v550 = vsel %vm544, %v540, %v532
        %v551 = vsel %vm544, %v541, %v533
        %v552 = vsel %vm544, %v542, %v534
        %v553 = vlaneseq
        %v554 = vshrl.u32 %v553, 7
        %v555 = vsub.s32 0, %v554
        %v556 = vrot.slane %v326, %v555
        %v557 = vlaneseq
        %v558 = vshrl.u32 %v557, 7
        %v559 = vsub.s32 0, %v558
        %v560 = vrot.slane %v340, %v559
        %v561 = vlaneseq
        %v562 = vshrl.u32 %v561, 7
        %v563 = vsub.s32 0, %v562
        %v564 = vrot.slane %v348, %v563
        %v565 = vlaneseq
        %v566 = vshrl.u32 %v565, 7
        %v567 = vsub.s32 0, %v566
        %v568 = vrot.slane %v350, %v567
        %v569 = vlaneseq
        %v570 = vshrl.u32 %v569, 7
        %v571 = vsub.s32 0, %v570
        %v572 = vrot.slane %v333, %v571
        %v573 = vlaneseq
        %v574 = vshrl.u32 %v573, 7
        %v575 = vsub.s32 0, %v574
        %v576 = vrot.slane %v347, %v575
        %v577 = vlaneseq
        %v578 = vshrl.u32 %v577, 7
        %v579 = vsub.s32 0, %v578
        %v580 = vrot.slane %v349, %v579
        %v581 = vlaneseq
        %v582 = vshrl.u32 %v581, 7
        %v583 = vsub.s32 0, %v582
        %v584 = vrot.slane %v351, %v583
        %v593 = vmul.f32 %v406, %v556
        %v594 = vmul.f32 %v407, %v560
        %v595 = vmul.f32 %v408, %v564
        %v596 = vmul.f32 %v409, %v568
        %v597 = vmul.f32 %v410, %v572
        %v598 = vmul.f32 %v411, %v576
        %v599 = vmul.f32 %v412, %v580
        %v600 = vmul.f32 %v413, %v584
        %v601 = vlaneseq
        %v602 = vshrl.u32 %v601, 7
        %v603 = vsub.s32 0, %v602
        %v604 = vrot.slane %v376, %v603
        %v605 = vlaneseq
        %v606 = vshrl.u32 %v605, 7
        %v607 = vsub.s32 0, %v606
        %v608 = vrot.slane %v390, %v607
        %v609 = vlaneseq
        %v610 = vshrl.u32 %v609, 7
        %v611 = vsub.s32 0, %v610
        %v612 = vrot.slane %v398, %v611
        %v613 = vlaneseq
        %v614 = vshrl.u32 %v613, 7
        %v615 = vsub.s32 0, %v614
        %v616 = vrot.slane %v400, %v615
        %v617 = vlaneseq
        %v618 = vshrl.u32 %v617, 7
        %v619 = vsub.s32 0, %v618
        %v620 = vrot.slane %v383, %v619
        %v621 = vlaneseq
        %v622 = vshrl.u32 %v621, 7
        %v623 = vsub.s32 0, %v622
        %v624 = vrot.slane %v397, %v623
        %v625 = vlaneseq
        %v626 = vshrl.u32 %v625, 7
        %v627 = vsub.s32 0, %v626
        %v628 = vrot.slane %v399, %v627
        %v629 = vlaneseq
        %v630 = vshrl.u32 %v629, 7
        %v631 = vsub.s32 0, %v630
        %v632 = vrot.slane %v401, %v631
        %v641 = vmul.f32 %v545, %v604
        %v642 = vmul.f32 %v546, %v608
        %v643 = vmul.f32 %v547, %v612
        %v644 = vmul.f32 %v548, %v616
        %v645 = vmul.f32 %v549, %v620
        %v646 = vmul.f32 %v550, %v624
        %v647 = vmul.f32 %v551, %v628
        %v648 = vmul.f32 %v552, %v632
        %v649 = vadd.f32 %v593, %v641
        %v650 = vadd.f32 %v594, %v642
        %v651 = vadd.f32 %v595, %v643
        %v652 = vadd.f32 %v596, %v644
        %v653 = vadd.f32 %v597, %v645
        %v654 = vadd.f32 %v598, %v646
        %v655 = vadd.f32 %v599, %v647
        %v656 = vadd.f32 %v600, %v648
        %v657 = vsel %vm405, 1, 0
        %vm658 = vcmp.eq.s32.totalorder %v657, 1
        %v659 = vsel %vm658, %v649, %v406
        %v660 = vsel %vm658, %v650, %v407
        %v661 = vsel %vm658, %v651, %v408
        %v662 = vsel %vm658, %v652, %v409
        %v663 = vsel %vm658, %v653, %v410
        %v664 = vsel %vm658, %v654, %v411
        %v665 = vsel %vm658, %v655, %v412
        %v666 = vsel %vm658, %v656, %v413
        %vm667 = vcmask 257024
        %668 = vst.msk [vmem:[%s272] sm:$0xf] %vm667, %v659
        %669 = vst.msk [vmem:[%s272 + $0x4] sm:$0xf] %vm667, %v660
        %670 = vst.msk [vmem:[%s272 + $0x8] sm:$0xf] %vm667, %v661
        %671 = vst.msk [vmem:[%s272 + $0xc] sm:$0xf] %vm667, %v662
        %672 = vst.msk [vmem:[%s272 + $0x10] sm:$0xf] %vm667, %v663
        %673 = vst.msk [vmem:[%s272 + $0x14] sm:$0xf] %vm667, %v664
        %674 = vst.msk [vmem:[%s272 + $0x18] sm:$0xf] %vm667, %v665
        %675 = vst.msk [vmem:[%s272 + $0x1c] sm:$0xf] %vm667, %v666
        %v676 = vld [vmem:[%s241] sm:$0x3]
        %v677 = vld [vmem:[%s241 + $0x2] sm:$0x3]
        %v678 = vld [vmem:[%s241 + $0x4] sm:$0x3]
        %v679 = vld [vmem:[%s241 + $0x6] sm:$0x3]
        %v680 = vld [vmem:[%s241 + $0x8] sm:$0x3]
        %v681 = vld [vmem:[%s241 + $0xa] sm:$0x3]
        %v682 = vld [vmem:[%s241 + $0xc] sm:$0x3]
        %v683 = vld [vmem:[%s241 + $0xe] sm:$0x3]
        %692 = vrot.lane.b32.xlu0 %v676, 120
        %v693 = vpop.permute.xlu0 %692
        %694 = vrot.lane.b32.xlu0 %v677, 120
        %v695 = vpop.permute.xlu0 %694
        %696 = vrot.lane.b32.xlu0 %v678, 120
        %v697 = vpop.permute.xlu0 %696
        %698 = vrot.lane.b32.xlu0 %v679, 120
        %v699 = vpop.permute.xlu0 %698
        %700 = vrot.lane.b32.xlu0 %v680, 120
        %v701 = vpop.permute.xlu0 %700
        %702 = vrot.lane.b32.xlu0 %v681, 120
        %v703 = vpop.permute.xlu0 %702
        %704 = vrot.lane.b32.xlu0 %v682, 120
        %v705 = vpop.permute.xlu0 %704
        %706 = vrot.lane.b32.xlu0 %v683, 120
        %v707 = vpop.permute.xlu0 %706
        %716 = vrot.lane.b32.xlu0 %v676, 24
        %v717 = vpop.permute.xlu0 %716
        %718 = vrot.lane.b32.xlu0 %v677, 24
        %v719 = vpop.permute.xlu0 %718
        %720 = vrot.lane.b32.xlu0 %v678, 24
        %v721 = vpop.permute.xlu0 %720
        %722 = vrot.lane.b32.xlu0 %v679, 24
        %v723 = vpop.permute.xlu0 %722
        %724 = vrot.lane.b32.xlu0 %v680, 24
        %v725 = vpop.permute.xlu0 %724
        %726 = vrot.lane.b32.xlu0 %v681, 24
        %v727 = vpop.permute.xlu0 %726
        %728 = vrot.lane.b32.xlu0 %v682, 24
        %v729 = vpop.permute.xlu0 %728
        %730 = vrot.lane.b32.xlu0 %v683, 24
        %v731 = vpop.permute.xlu0 %730
        %v740 = vsel %vm470, %v693, %v717
        %v741 = vsel %vm470, %v695, %v719
        %v742 = vsel %vm470, %v697, %v721
        %v743 = vsel %vm470, %v699, %v723
        %v744 = vsel %vm470, %v701, %v725
        %v745 = vsel %vm470, %v703, %v727
        %v746 = vsel %vm470, %v705, %v729
        %v747 = vsel %vm470, %v707, %v731
        %748 = vrot.lane.b32.xlu0 %v676, 104
        %v749 = vpop.permute.xlu0 %748
        %750 = vrot.lane.b32.xlu0 %v677, 104
        %v751 = vpop.permute.xlu0 %750
        %752 = vrot.lane.b32.xlu0 %v678, 104
        %v753 = vpop.permute.xlu0 %752
        %754 = vrot.lane.b32.xlu0 %v679, 104
        %v755 = vpop.permute.xlu0 %754
        %756 = vrot.lane.b32.xlu0 %v680, 104
        %v757 = vpop.permute.xlu0 %756
        %758 = vrot.lane.b32.xlu0 %v681, 104
        %v759 = vpop.permute.xlu0 %758
        %760 = vrot.lane.b32.xlu0 %v682, 104
        %v761 = vpop.permute.xlu0 %760
        %762 = vrot.lane.b32.xlu0 %v683, 104
        %v763 = vpop.permute.xlu0 %762
        %772 = vrot.lane.b32.xlu0 %v676, 8
        %v773 = vpop.permute.xlu0 %772
        %774 = vrot.lane.b32.xlu0 %v677, 8
        %v775 = vpop.permute.xlu0 %774
        %776 = vrot.lane.b32.xlu0 %v678, 8
        %v777 = vpop.permute.xlu0 %776
        %778 = vrot.lane.b32.xlu0 %v679, 8
        %v779 = vpop.permute.xlu0 %778
        %780 = vrot.lane.b32.xlu0 %v680, 8
        %v781 = vpop.permute.xlu0 %780
        %782 = vrot.lane.b32.xlu0 %v681, 8
        %v783 = vpop.permute.xlu0 %782
        %784 = vrot.lane.b32.xlu0 %v682, 8
        %v785 = vpop.permute.xlu0 %784
        %786 = vrot.lane.b32.xlu0 %v683, 8
        %v787 = vpop.permute.xlu0 %786
        %v796 = vsel %vm293, %v749, %v773
        %v797 = vsel %vm293, %v751, %v775
        %v798 = vsel %vm293, %v753, %v777
        %v799 = vsel %vm293, %v755, %v779
        %v800 = vsel %vm293, %v757, %v781
        %v801 = vsel %vm293, %v759, %v783
        %v802 = vsel %vm293, %v761, %v785
        %v803 = vsel %vm293, %v763, %v787
        %v804 = vsub.f32 0.0, %v740
        %v805 = vsub.f32 0.0, %v741
        %v806 = vsub.f32 0.0, %v742
        %v807 = vsub.f32 0.0, %v743
        %v808 = vsub.f32 0.0, %v744
        %v809 = vsub.f32 0.0, %v745
        %v810 = vsub.f32 0.0, %v746
        %v811 = vsub.f32 0.0, %v747
        %v812 = vsel %vm544, %v804, %v796
        %v813 = vsel %vm544, %v805, %v797
        %v814 = vsel %vm544, %v806, %v798
        %v815 = vsel %vm544, %v807, %v799
        %v816 = vsel %vm544, %v808, %v800
        %v817 = vsel %vm544, %v809, %v801
        %v818 = vsel %vm544, %v810, %v802
        %v819 = vsel %vm544, %v811, %v803
        %v820 = vmul.f32 %v676, %v556
        %v821 = vmul.f32 %v677, %v560
        %v822 = vmul.f32 %v678, %v564
        %v823 = vmul.f32 %v679, %v568
        %v824 = vmul.f32 %v680, %v572
        %v825 = vmul.f32 %v681, %v576
        %v826 = vmul.f32 %v682, %v580
        %v827 = vmul.f32 %v683, %v584
        %v828 = vmul.f32 %v812, %v604
        %v829 = vmul.f32 %v813, %v608
        %v830 = vmul.f32 %v814, %v612
        %v831 = vmul.f32 %v815, %v616
        %v832 = vmul.f32 %v816, %v620
        %v833 = vmul.f32 %v817, %v624
        %v834 = vmul.f32 %v818, %v628
        %v835 = vmul.f32 %v819, %v632
        %v836 = vadd.f32 %v820, %v828
        %v837 = vadd.f32 %v821, %v829
        %v838 = vadd.f32 %v822, %v830
        %v839 = vadd.f32 %v823, %v831
        %v840 = vadd.f32 %v824, %v832
        %v841 = vadd.f32 %v825, %v833
        %v842 = vadd.f32 %v826, %v834
        %v843 = vadd.f32 %v827, %v835
        %v844 = vsel %vm658, %v836, %v676
        %v845 = vsel %vm658, %v837, %v677
        %v846 = vsel %vm658, %v838, %v678
        %v847 = vsel %vm658, %v839, %v679
        %v848 = vsel %vm658, %v840, %v680
        %v849 = vsel %vm658, %v841, %v681
        %v850 = vsel %vm658, %v842, %v682
        %v851 = vsel %vm658, %v843, %v683
        %vm852 = vcmask 254976
        %853 = vst.msk [vmem:[%s279] sm:$0x3] %vm852, %v844
        %854 = vst.msk [vmem:[%s279 + $0x2] sm:$0x3] %vm852, %v845
        %855 = vst.msk [vmem:[%s279 + $0x4] sm:$0x3] %vm852, %v846
        %856 = vst.msk [vmem:[%s279 + $0x6] sm:$0x3] %vm852, %v847
        %857 = vst.msk [vmem:[%s279 + $0x8] sm:$0x3] %vm852, %v848
        %858 = vst.msk [vmem:[%s279 + $0xa] sm:$0x3] %vm852, %v849
        %859 = vst.msk [vmem:[%s279 + $0xc] sm:$0x3] %vm852, %v850
        %860 = vst.msk [vmem:[%s279 + $0xe] sm:$0x3] %vm852, %v851
        %s861 = sand.u32 %s114, 1
        %s862 = scalar_lea.sflag [#allocation4], %s861
        %s863 = sand.u32 %s114, 1
        %s864 = smul.addr %s863, 32
        %s865 = scalar_lea.vmem [#allocation7], %s864
        %s866 = sand.u32 %s140, 1
        %s867 = scalar_lea.sflag [#allocation9], %s866
        %s868 = sand.u32 %s140, 1
        %s869 = smul.addr %s868, 16
        %s870 = scalar_lea.vmem [#allocation8], %s869
        // Predicated region
        $region41: #{tpu_custom_call.1} parent=31 // pred_check
          %p871 = pneg %p124
        $region42: #{tpu_custom_call.1} parent=31 // pred_check_branch
          %873 = sbr.rel (%p871) target = $region44
        $region43: #{tpu_custom_call.1} parent=31 // pred_region
          %s874 = smul.u32 8, %s28
          %s876 = ssub.s32 512, 512
          %877 = vsyncadd %s862, %s876
          %s878 = smul.addr %s874, 64
          %s879 = scalar_lea.hbm %s3, %s878
          %s880 = sshll.u32 %s865, 4
          %s881 = int_to_ptr.vmem [resolvable:$true] %s880
          %886 = dma.vmem_to_hbm [thread:$0]  %s881, 512, %s879, %s862, 64, 64, 4
        $region44: #{tpu_custom_call.1} parent=31 // pred_fallthru
          _
        // Predicated region
        $region45: #{tpu_custom_call.1} parent=31 // pred_check
          %p887 = pneg %p150
        $region46: #{tpu_custom_call.1} parent=31 // pred_check_branch
          %889 = sbr.rel (%p887) target = $region48
        $region47: #{tpu_custom_call.1} parent=31 // pred_region
          %s890 = smul.u32 8, %s28
          %s892 = ssub.s32 256, 256
          %893 = vsyncadd %s867, %s892
          %s894 = smul.addr %s890, 32
          %s895 = scalar_lea.hbm %s4, %s894
          %s896 = sshll.u32 %s870, 4
          %s897 = int_to_ptr.vmem [resolvable:$true] %s896
          %902 = dma.vmem_to_hbm [thread:$0]  %s897, 256, %s895, %s867, 32, 32, 2
        $region48: #{tpu_custom_call.1} parent=31 // pred_fallthru
          _
      $region32: #{tpu_custom_call.1} parent=5 // pred_fallthru
        _
      %p903 = scmp.le.s32.totalorder 2, %s23
      // Predicated region
      $region49: #{tpu_custom_call.1} parent=5 // pred_check
        %p904 = pneg %p903
      $region50: #{tpu_custom_call.1} parent=5 // pred_check_branch
        %906 = sbr.rel (%p904) target = $region52
      $region51: #{tpu_custom_call.1} parent=5 // pred_region
        %s907 = ssub.s32 %s23, 2
        // Predicated region
        $region53: #{tpu_custom_call.1} parent=51 // pred_check
          %p908 = pneg %p130
        $region54: #{tpu_custom_call.1} parent=51 // pred_check_branch
          %910 = sbr.rel (%p908) target = $region56
        $region55: #{tpu_custom_call.1} parent=51 // pred_region
          %s911 = sand.u32 %s115, 1
          %s912 = scalar_lea.sflag [#allocation4], %s911
          %s913 = sand.u32 %s115, 1
          %s914 = smul.addr %s913, 32
          %s915 = scalar_lea.vmem [#allocation7], %s914
          %916 = dma.done %s912, 512
        $region56: #{tpu_custom_call.1} parent=51 // pred_fallthru
          _
        // Predicated region
        $region57: #{tpu_custom_call.1} parent=51 // pred_check
          %p917 = pneg %p156
        $region58: #{tpu_custom_call.1} parent=51 // pred_check_branch
          %919 = sbr.rel (%p917) target = $region60
        $region59: #{tpu_custom_call.1} parent=51 // pred_region
          %s920 = sand.u32 %s141, 1
          %s921 = scalar_lea.sflag [#allocation9], %s920
          %s922 = sand.u32 %s141, 1
          %s923 = smul.addr %s922, 16
          %s924 = scalar_lea.vmem [#allocation8], %s923
          %925 = dma.done %s921, 256
        $region60: #{tpu_custom_call.1} parent=51 // pred_fallthru
          _
      $region52: #{tpu_custom_call.1} parent=5 // pred_fallthru
        _
    $region6: #{tpu_custom_call.1} parent=1 // loop_footer
      %s27 = sadd.s32 1, %s23
    $region7: #{tpu_custom_call.1} parent=1 // loop_footer_branch
      %22 = sbr.rel target = $region3
    $region8: #{tpu_custom_call.1} parent=1 // loop_exit
      _
    %926 = vsyncpa [#allocation3], 1
    %s927 = scalar_lea.sflag [#allocation3], 1
    %928 = vsyncpa %s927, 1
    %929 = vsyncpa [#allocation6], 1
    %s930 = scalar_lea.sflag [#allocation6], 1
    %931 = vsyncpa %s930, 1
    %932 = vsyncpa [#allocation4], 1
    %s933 = scalar_lea.sflag [#allocation4], 1
    %934 = vsyncpa %s933, 1
    %935 = vsyncpa [#allocation9], 1
    %s936 = scalar_lea.sflag [#allocation9], 1
    %937 = vsyncpa %s936, 1

</llo_original>
